<compile_context>
chip_gen: v7x
topology: tpu7x:2x2x1
jax: 0.10.0
libtpu: 0.0.40
codegen_flags: <defaults>
</compile_context>

<pallas_src>
import functools

import jax
import jax.numpy as jnp
from jax import lax
from jax.experimental import pallas as pl
from jax.experimental.pallas import tpu as pltpu


def _prep_kernel(emb_ref, bpool_ref, cheb_ref, bias_ref, *, cheb_k):
    """One-shot batch-invariant prep: Chebyshev supports T_1..T_{K-1} and bias."""
    E = emb_ref[...]                                                  # [N, D] f32
    N = E.shape[0]

    # supports = softmax(relu(E @ E.T), axis=1)
    a = lax.dot_general(E, E, dimension_numbers=(((1,), (1,)), ((), ())),
                        preferred_element_type=jnp.float32)           # [N, N]
    a = jnp.maximum(a, 0.0)
    a = a - jnp.max(a, axis=1, keepdims=True)
    ea = jnp.exp(a)
    supports = ea / jnp.sum(ea, axis=1, keepdims=True)                # [N, N]

    cheb_ref[0] = supports                                            # T_1
    if cheb_k > 2:
        rows = lax.broadcasted_iota(jnp.int32, (N, N), 0)
        cols = lax.broadcasted_iota(jnp.int32, (N, N), 1)
        prev_prev = (rows == cols).astype(jnp.float32)                # T_0 = I
        prev = supports
        for k in range(2, cheb_k):
            cur = 2.0 * jnp.dot(supports, prev,
                                preferred_element_type=jnp.float32) - prev_prev
            cheb_ref[k - 1] = cur
            prev_prev, prev = prev, cur

    bias_ref[...] = jnp.dot(E, bpool_ref[...],
                            preferred_element_type=jnp.float32)       # [N, dim_out]


def _avwgcn_kernel(cheb_ref, emb_ref, bias_ref, wp_ref, x_ref, out_ref, *,
                   cheb_k, dim_out, batch_tile):
    """One grid step = a tile of `batch_tile` batch elements."""
    E = emb_ref[...]                                                  # [N, D]
    embed_dim = E.shape[1]
    bias = bias_ref[...]                                              # [N, dim_out]

    # Hoist invariant loads / slices out of the batch loop (no reliance on CSE).
    wps = [wp_ref[k] for k in range(cheb_k)]                          # [dim_in, D*do]
    chebs = [cheb_ref[k] for k in range(cheb_k - 1)]                  # [N, N]
    e_cols = [E[:, d:d + 1] for d in range(embed_dim)]                # [N, 1]

    for b in range(batch_tile):
        x_b = x_ref[b]                                                # [N, dim_in]
        # k = 0 is the identity support: I @ x_b == x_b, skip the matmul.
        t = jnp.dot(x_b, wps[0], preferred_element_type=jnp.float32)  # [N, D*do]
        for k in range(1, cheb_k):
            xg_k = jnp.dot(chebs[k - 1], x_b,
                           preferred_element_type=jnp.float32)        # [N, dim_in]
            t = t + jnp.dot(xg_k, wps[k], preferred_element_type=jnp.float32)
        # out[n, o] = bias[n, o] + sum_d E[n, d] * t[n, d*dim_out + o]
        acc = bias
        for d in range(embed_dim):
            acc = acc + e_cols[d] * t[:, d * dim_out:(d + 1) * dim_out]
        out_ref[b] = acc


def _pick_batch_tile(batch, max_tile=8):
    tile = min(batch, max_tile)
    while batch % tile:
        tile -= 1
    return tile


def avwgcn(x, node_embeddings, weights_pool, bias_pool):
    B, N, dim_in = x.shape
    embed_dim, cheb_k, dim_in_w, dim_out = weights_pool.shape
    assert dim_in_w == dim_in
    assert cheb_k >= 2, "AVWGCN (as used in AGCRN) requires cheb_k >= 2"

    x = x.astype(jnp.float32)
    node_embeddings = node_embeddings.astype(jnp.float32)

    # --- One-shot batch-invariant prep kernel -------------------------------
    cheb, bias = pl.pallas_call(
        functools.partial(_prep_kernel, cheb_k=cheb_k),
        out_shape=(jax.ShapeDtypeStruct((cheb_k - 1, N, N), jnp.float32),
                   jax.ShapeDtypeStruct((N, dim_out), jnp.float32)),
        grid=(1,),
        in_specs=[pl.BlockSpec((N, embed_dim), lambda i: (0, 0)),
                  pl.BlockSpec((embed_dim, dim_out), lambda i: (0, 0))],
        out_specs=(pl.BlockSpec((cheb_k - 1, N, N), lambda i: (0, 0, 0)),
                   pl.BlockSpec((N, dim_out), lambda i: (0, 0))),
    )(node_embeddings, bias_pool.astype(jnp.float32))

    # weights_pool[d, k, i, o]  ->  wp_perm[k, i, d*dim_out + o]  (trace-time layout)
    wp_perm = jnp.transpose(weights_pool.astype(jnp.float32), (1, 2, 0, 3)).reshape(
        cheb_k, dim_in, embed_dim * dim_out)

    # --- Batched main kernel --------------------------------------------------
    tb = _pick_batch_tile(B)
    kernel = functools.partial(_avwgcn_kernel, cheb_k=cheb_k, dim_out=dim_out,
                               batch_tile=tb)
    return pl.pallas_call(
        kernel,
        out_shape=jax.ShapeDtypeStruct((B, N, dim_out), jnp.float32),
        grid=(B // tb,),
        in_specs=[
            pl.BlockSpec((cheb_k - 1, N, N), lambda b: (0, 0, 0)),
            pl.BlockSpec((N, embed_dim), lambda b: (0, 0)),
            pl.BlockSpec((N, dim_out), lambda b: (0, 0)),
            pl.BlockSpec((cheb_k, dim_in, embed_dim * dim_out), lambda b: (0, 0, 0)),
            pl.BlockSpec((tb, N, dim_in), lambda b: (b, 0, 0)),
        ],
        out_specs=pl.BlockSpec((tb, N, dim_out), lambda b: (b, 0, 0)),
        compiler_params=pltpu.CompilerParams(dimension_semantics=("parallel",)),
    )(cheb, node_embeddings, bias, wp_perm, x)


def avwgcn_ref(x, node_embeddings, weights_pool, bias_pool):
    """Pure-JAX reference mirroring the PyTorch forward exactly."""
    N = node_embeddings.shape[0]
    cheb_k = weights_pool.shape[1]
    supports = jax.nn.softmax(jax.nn.relu(node_embeddings @ node_embeddings.T), axis=1)
    support_set = [jnp.eye(N, dtype=jnp.float32), supports]
    for _ in range(2, cheb_k):
        support_set.append(2.0 * supports @ support_set[-1] - support_set[-2])
    supports = jnp.stack(support_set, axis=0)                         # [K, N, N]
    weights = jnp.einsum('nd,dkio->nkio', node_embeddings, weights_pool)
    bias = node_embeddings @ bias_pool
    x_g = jnp.einsum('knm,bmc->bknc', supports, x)
    x_g = jnp.transpose(x_g, (0, 2, 1, 3))
    return jnp.einsum('bnki,nkio->bno', x_g, weights) + bias


if __name__ == "__main__":
    B, N, dim_in, dim_out, cheb_k, embed_dim = 2, 16, 4, 8, 3, 8

    key = jax.random.PRNGKey(0)
    k_x, k_e, k_w, k_b = jax.random.split(key, 4)
    x = jax.random.normal(k_x, (B, N, dim_in), dtype=jnp.float32)
    node_embeddings = jax.random.normal(k_e, (N, embed_dim), dtype=jnp.float32) * 0.5
    weights_pool = jax.random.normal(k_w, (embed_dim, cheb_k, dim_in, dim_out),
                                     dtype=jnp.float32) * 0.1
    bias_pool = jax.random.normal(k_b, (embed_dim, dim_out), dtype=jnp.float32) * 0.1

    out = jax.block_until_ready(avwgcn(x, node_embeddings, weights_pool, bias_pool))
    ref = jax.block_until_ready(avwgcn_ref(x, node_embeddings, weights_pool, bias_pool))

    assert out.shape == (B, N, dim_out), out.shape
    assert jnp.allclose(out, ref, atol=2e-4, rtol=2e-4), float(jnp.max(jnp.abs(out - ref)))
    print("KERNEL_OK")
</pallas_src>

<mosaic_0001>
module attributes {stable_mosaic.version = 11 : i64} {
  func.func @_prep_kernel(%arg0: i32, %arg1: memref<16x8xf32, #tpu.memory_space<vmem>>, %arg2: memref<8x8xf32, #tpu.memory_space<vmem>>, %arg3: memref<2x16x16xf32, #tpu.memory_space<vmem>>, %arg4: memref<16x8xf32, #tpu.memory_space<vmem>>) attributes {dimension_semantics = [#tpu.dimension_semantics<arbitrary>], iteration_bounds = array<i64: 1>, scalar_prefetch = 0 : i64, scratch_operands = 0 : i64, tpu.core_type = #tpu.core_type<tc>, window_params = [{pipeline_mode = #tpu.pipeline_mode<synchronous>, transform_indices = @transform_0, window_bounds = array<i64: 16, 8>}, {pipeline_mode = #tpu.pipeline_mode<synchronous>, transform_indices = @transform_1, window_bounds = array<i64: 8, 8>}, {pipeline_mode = #tpu.pipeline_mode<synchronous>, transform_indices = @transform_2, window_bounds = array<i64: 2, 16, 16>}, {pipeline_mode = #tpu.pipeline_mode<synchronous>, transform_indices = @transform_3, window_bounds = array<i64: 16, 8>}]} {
    %c0 = arith.constant 0 : index
    %c0_0 = arith.constant 0 : index
    %0 = vector.load %arg1[%c0, %c0_0] : memref<16x8xf32, #tpu.memory_space<vmem>>, vector<16x8xf32>
    %cst = arith.constant dense<0.000000e+00> : vector<16x16xf32>
    %1 = tpu.matmul %0, %0, %cst {dimension_numbers = #tpu.dot_dimension_numbers<[1], [1], [0], [0], [0, 0, 1, 0], [], []>} : vector<16x8xf32>, vector<16x8xf32>, vector<16x16xf32> -> vector<16x16xf32>
    %cst_1 = arith.constant 0.000000e+00 : f32
    %2 = vector.broadcast %cst_1 : f32 to vector<16x16xf32>
    %3 = arith.maximumf %1, %2 : vector<16x16xf32>
    %cst_2 = arith.constant dense<0xFF800000> : vector<16xf32>
    %4 = vector.multi_reduction <maximumf>, %3, %cst_2 [1] : vector<16x16xf32> to vector<16xf32>
    %5 = vector.shape_cast %4 : vector<16xf32> to vector<16x1xf32>
    %6 = vector.broadcast %5 : vector<16x1xf32> to vector<16x16xf32>
    %7 = arith.subf %3, %6 : vector<16x16xf32>
    %8 = math.exp %7 : vector<16x16xf32>
    %cst_3 = arith.constant dense<0.000000e+00> : vector<16xf32>
    %9 = vector.multi_reduction <add>, %8, %cst_3 [1] : vector<16x16xf32> to vector<16xf32>
    %10 = vector.shape_cast %9 : vector<16xf32> to vector<16x1xf32>
    %11 = vector.broadcast %10 : vector<16x1xf32> to vector<16x16xf32>
    %12 = arith.divf %8, %11 : vector<16x16xf32>
    %c0_4 = arith.constant 0 : index
    %c0_5 = arith.constant 0 : index
    %c0_6 = arith.constant 0 : index
    %13 = vector.load %arg3[%c0_4, %c0_5, %c0_6] : memref<2x16x16xf32, #tpu.memory_space<vmem>>, vector<1x16x16xf32>
    %14 = vector.shape_cast %13 : vector<1x16x16xf32> to vector<16x16xf32>
    %15 = vector.shape_cast %12 : vector<16x16xf32> to vector<1x16x16xf32>
    tpu.vector_store %arg3[%c0_4, %c0_5, %c0_6], %15 {strides = array<i32>} : memref<2x16x16xf32, #tpu.memory_space<vmem>>, vector<1x16x16xf32>,
    %16 = tpu.iota {dimensions = array<i32: 0>} : vector<16x16xi32>
    %17 = tpu.iota {dimensions = array<i32: 1>} : vector<16x16xi32>
    %18 = arith.cmpi eq, %16, %17 : vector<16x16xi32>
    %19 = arith.extui %18 : vector<16x16xi1> to vector<16x16xi32>
    %20 = arith.sitofp %19 : vector<16x16xi32> to vector<16x16xf32>
    %cst_7 = arith.constant dense<0.000000e+00> : vector<16x16xf32>
    %21 = tpu.matmul %12, %12, %cst_7 {dimension_numbers = #tpu.dot_dimension_numbers<[1], [0], [0], [1], [0, 0, 1, 1], [], []>} : vector<16x16xf32>, vector<16x16xf32>, vector<16x16xf32> -> vector<16x16xf32>
    %cst_8 = arith.constant 2.000000e+00 : f32
    %22 = vector.broadcast %cst_8 : f32 to vector<16x16xf32>
    %23 = arith.mulf %22, %21 : vector<16x16xf32>
    %24 = arith.subf %23, %20 : vector<16x16xf32>
    %c1 = arith.constant 1 : index
    %c0_9 = arith.constant 0 : index
    %c0_10 = arith.constant 0 : index
    %25 = vector.load %arg3[%c1, %c0_9, %c0_10] : memref<2x16x16xf32, #tpu.memory_space<vmem>>, vector<1x16x16xf32>
    %26 = vector.shape_cast %25 : vector<1x16x16xf32> to vector<16x16xf32>
    %27 = vector.shape_cast %24 : vector<16x16xf32> to vector<1x16x16xf32>
    tpu.vector_store %arg3[%c1, %c0_9, %c0_10], %27 {strides = array<i32>} : memref<2x16x16xf32, #tpu.memory_space<vmem>>, vector<1x16x16xf32>,
    %c0_11 = arith.constant 0 : index
    %c0_12 = arith.constant 0 : index
    %28 = vector.load %arg2[%c0_11, %c0_12] : memref<8x8xf32, #tpu.memory_space<vmem>>, vector<8x8xf32>
    %cst_13 = arith.constant dense<0.000000e+00> : vector<16x8xf32>
    %29 = tpu.matmul %0, %28, %cst_13 {dimension_numbers = #tpu.dot_dimension_numbers<[1], [0], [0], [1], [0, 0, 1, 1], [], []>} : vector<16x8xf32>, vector<8x8xf32>, vector<16x8xf32> -> vector<16x8xf32>
    %c0_14 = arith.constant 0 : index
    %c0_15 = arith.constant 0 : index
    %30 = vector.load %arg4[%c0_14, %c0_15] : memref<16x8xf32, #tpu.memory_space<vmem>>, vector<16x8xf32>
    tpu.vector_store %arg4[%c0_14, %c0_15], %29 {strides = array<i32>} : memref<16x8xf32, #tpu.memory_space<vmem>>, vector<16x8xf32>,
    return
  }
  func.func @transform_0(%arg0: i32) -> (i32, i32) {
    %c0_i32 = arith.constant 0 : i32
    %c0_i32_0 = arith.constant 0 : i32
    %c0_i32_1 = arith.constant 0 : i32
    return %c0_i32, %c0_i32_0 : i32, i32
  }
  func.func @transform_1(%arg0: i32) -> (i32, i32) {
    %c0_i32 = arith.constant 0 : i32
    %c0_i32_0 = arith.constant 0 : i32
    %c0_i32_1 = arith.constant 0 : i32
    return %c0_i32, %c0_i32_0 : i32, i32
  }
  func.func @transform_2(%arg0: i32) -> (i32, i32, i32) {
    %c0_i32 = arith.constant 0 : i32
    %c0_i32_0 = arith.constant 0 : i32
    %c0_i32_1 = arith.constant 0 : i32
    %c0_i32_2 = arith.constant 0 : i32
    return %c0_i32, %c0_i32_0, %c0_i32_1 : i32, i32, i32
  }
  func.func @transform_3(%arg0: i32) -> (i32, i32) {
    %c0_i32 = arith.constant 0 : i32
    %c0_i32_0 = arith.constant 0 : i32
    %c0_i32_1 = arith.constant 0 : i32
    return %c0_i32, %c0_i32_0 : i32, i32
  }
}

</mosaic_0001>

<llo_original>
// kernel: tpu_custom_call.1
$region0: #{tpu_custom_call.1}
  #allocation0 [shape = 'u32[]', space=smem, size = 0x4, offset = 0x4, fixed_abs, tag = 'smem constant byte address 0x4 - core index']
  #allocation1 [shape = 'u32[144,128]{1,0:T(1,128)}', space=vmem, size = 0x12000, scoped, tag = 'internal scratch']
  %s0 = inlined_call_operand.vmem [shape: f32[16,8], index: 0, kind: input, shape index: {}]
  %s1 = inlined_call_operand.vmem [shape: f32[8,8], index: 1, kind: input, shape index: {}]
  %s2 = inlined_call_operand.hbm [shape: f32[2,16,16], index: 2, kind: output, shape index: {0}]
  %s3 = inlined_call_operand.vmem [shape: f32[16,8], index: 3, kind: output, shape index: {1}]
  %4 = xla_tuple %s2, %s3
  %s5 = sld [smem:[#allocation0]]
  $region26: #{tpu_custom_call.1} parent=0
    _
  %s7 = ssub.s32 1, %s5
  %s8 = scalar_select 0, %s7, %s5
  $region1: #{tpu_custom_call.1} parent=0
    #allocation2 [shape = 'u8[16384]{0}', space=vmem, size = 0x4000, scoped, tag = 'output window, operand 0, single buffered']
    #allocation3 [shape = 's32[1]{0}', space=sflag, size = 0x4, scoped, tag = 'scoped memory for tpu_custom_call.1']
    %9 = vsyncpa [#allocation3], 0
    // Predicated region
    $region2: #{tpu_custom_call.1} parent=1 // pred_check
      _
    $region3: #{tpu_custom_call.1} parent=1 // pred_check_branch
      %11 = sbr.rel (0) target = $region5
    $region4: #{tpu_custom_call.1} parent=1 // pred_region
      _
    $region5: #{tpu_custom_call.1} parent=1 // pred_fallthru
      _
    // Predicated region
    $region6: #{tpu_custom_call.1} parent=1 // pred_check
      _
    $region7: #{tpu_custom_call.1} parent=1 // pred_check_branch
      %13 = sbr.rel (0) target = $region9
    $region8: #{tpu_custom_call.1} parent=1 // pred_region
      _
    $region9: #{tpu_custom_call.1} parent=1 // pred_fallthru
      _
    %v14 = vld [vmem:[%s0] sm:$0xff]
    %v15 = vld [vmem:[%s0 + $0x8] sm:$0xff]
    %vm16 = vcmask 64512
    %v18 = vsel %vm16, %v14, 0
    %v21 = vsel %vm16, %v15, 0
    %23 = vmatprep.subr.mxu0 0.0
    %24 = vmatpush1.xpose.msra.mxu0 %v18
    %25 = vmatprep.subr.mxu0 0.0
    %26 = vmatpush1.xpose.msra.mxu0 %v21
    %27 = vmatprep.subr.mxu0 0.0
    %28 = vmatpush1.xpose.msra.mxu0 0.0
    %29 = vmatprep.subr.mxu0 0.0
    %30 = vmatpush1.xpose.msra.mxu0 0.0
    %31 = vmatprep.subr.mxu0 0.0
    %32 = vmatpush1.xpose.msra.mxu0 0.0
    %33 = vmatprep.subr.mxu0 0.0
    %34 = vmatpush1.xpose.msra.mxu0 0.0
    %35 = vmatprep.subr.mxu0 0.0
    %36 = vmatpush1.xpose.msra.mxu0 0.0
    %37 = vmatprep.subr.mxu0 0.0
    %38 = vmatpush1.xpose.msra.mxu0 0.0
    %39 = vmatprep.subr.mxu0 0.0
    %40 = vmatpush1.xpose.msra.mxu0 0.0
    %41 = vmatprep.subr.mxu0 0.0
    %42 = vmatpush1.xpose.msra.mxu0 0.0
    %43 = vmatprep.subr.mxu0 0.0
    %44 = vmatpush1.xpose.msra.mxu0 0.0
    %45 = vmatprep.subr.mxu0 0.0
    %46 = vmatpush1.xpose.msra.mxu0 0.0
    %47 = vmatprep.subr.mxu0 0.0
    %48 = vmatpush1.xpose.msra.mxu0 0.0
    %49 = vmatprep.subr.mxu0 0.0
    %50 = vmatpush1.xpose.msra.mxu0 0.0
    %51 = vmatprep.subr.mxu0 0.0
    %52 = vmatpush1.xpose.msra.mxu0 0.0
    %53 = vmatprep.subr.mxu0 0.0
    %54 = vmatpush1.xpose.msra.mxu0 0.0
    %55 = vmatprep.subr.mxu0 0.0
    %56 = vmatpush1.xpose.msra.mxu0 0.0
    %57 = vmatprep.subr.mxu0 0.0
    %58 = vmatpush1.xpose.msra.mxu0 0.0
    %59 = vmatprep.subr.mxu0 0.0
    %60 = vmatpush1.xpose.msra.mxu0 0.0
    %61 = vmatprep.subr.mxu0 0.0
    %62 = vmatpush1.xpose.msra.mxu0 0.0
    %63 = vmatprep.subr.mxu0 0.0
    %64 = vmatpush1.xpose.msra.mxu0 0.0
    %65 = vmatprep.subr.mxu0 0.0
    %66 = vmatpush1.xpose.msra.mxu0 0.0
    %67 = vmatprep.subr.mxu0 0.0
    %68 = vmatpush1.xpose.msra.mxu0 0.0
    %69 = vmatprep.subr.mxu0 0.0
    %70 = vmatpush1.xpose.msra.mxu0 0.0
    %71 = vmatprep.subr.mxu0 0.0
    %72 = vmatpush1.xpose.msra.mxu0 0.0
    %73 = vmatprep.subr.mxu0 0.0
    %74 = vmatpush1.xpose.msra.mxu0 0.0
    %75 = vmatprep.subr.mxu0 0.0
    %76 = vmatpush1.xpose.msra.mxu0 0.0
    %77 = vmatprep.subr.mxu0 0.0
    %78 = vmatpush1.xpose.msra.mxu0 0.0
    %79 = vmatprep.subr.mxu0 0.0
    %80 = vmatpush1.xpose.msra.mxu0 0.0
    %81 = vmatprep.subr.mxu0 0.0
    %82 = vmatpush1.xpose.msra.mxu0 0.0
    %83 = vmatprep.subr.mxu0 0.0
    %84 = vmatpush1.xpose.msra.mxu0 0.0
    %85 = vmatprep.subr.mxu0 0.0
    %86 = vmatpush1.xpose.msra.mxu0 0.0
    %87 = vmatprep.mubr.f32.mxu0 0.0
    %88 = vmatmul.mubr.f32.gmra.mrb[0].mxu0 %v18
    %v89 = vpop.f32.mrb[0].mxu0
    %v90 = vadd.f32 0.0, %v89
    %v91 = vpop.f32.mrb[0].mxu0
    %92 = vmatprep.mubr.f32.mxu0 0.0
    %93 = vmatmul.mubr.f32.gmra.mrb[0].mxu0 %v21
    %v94 = vpop.f32.mrb[0].mxu0
    %v95 = vadd.f32 0.0, %v94
    %v96 = vpop.f32.mrb[0].mxu0
    %97 = vdwg.mxu0
    %v98 = vmax.f32 %v90, 0.0
    %v99 = vmax.f32 %v95, 0.0
    %vm100 = vcmask 130048
    %v101 = vsel %vm100, %v98, -inf
    %102 = vmax.xlane.f32.xlu0 %v101
    %v103 = vpop.xlane.xlu0 %102
    %v104 = vsel %vm100, %v99, -inf
    %105 = vmax.xlane.f32.xlu0 %v104
    %v106 = vpop.xlane.xlu0 %105
    %v107 = vsub.f32 %v98, %v103
    %v108 = vsub.f32 %v99, %v106
    %v109 = vmul.f32 %v107, 1.442695
    %v110 = vpow.pop %v109
    %v111 = vmul.f32 %v108, 1.442695
    %v112 = vpow.pop %v111
    %v113 = vsel %vm100, %v110, 0.0
    %114 = vadd.xlane.f32.xlu0 %v113
    %v115 = vpop.xlane.xlu0 %114
    %v116 = vsel %vm100, %v112, 0.0
    %117 = vadd.xlane.f32.xlu0 %v116
    %v118 = vpop.xlane.xlu0 %117
    %v119 = vrcp.pop %v115
    %v120 = vmul.f32 %v110, %v119
    %v121 = vrcp.pop %v118
    %v122 = vmul.f32 %v112, %v121
    %123 = vst.msk [vmem:[#allocation2] sm:$0xff] %vm100, %v120
    %124 = vst.msk [vmem:[#allocation2 + $0x8] sm:$0xff] %vm100, %v122
    %v125 = vlaneseq
    %v126 = vshrl.u32 %v125, 7
    %v127 = vadd.s32 %v126, 8
    %v128 = vlaneseq
    %v129 = vand.u32 %v128, 127
    %vm130 = vcmp.eq.s32.totalorder %v126, %v129
    %vm131 = vcmp.eq.s32.totalorder %v127, %v129
    %v132 = vsel %vm130, 1, 0
    %v133 = vsel %vm131, 1, 0
    %v134 = vcvt.s32.f32 %v132
    %v135 = vcvt.s32.f32 %v133
    %v137 = vsel %vm100, %v120, 0
    %v140 = vsel %vm100, %v122, 0
    %142 = vmatprep.subr.mxu0 0.0
    %143 = vmatpush1.msra.mxu0 %v120
    %144 = vmatprep.subr.mxu0 0.0
    %145 = vmatpush1.msra.mxu0 %v122
    %146 = vmatprep.subr.mxu0 0.0
    %147 = vmatpush1.msra.mxu0 0.0
    %148 = vmatprep.subr.mxu0 0.0
    %149 = vmatpush1.msra.mxu0 0.0
    %150 = vmatprep.subr.mxu0 0.0
    %151 = vmatpush1.msra.mxu0 0.0
    %152 = vmatprep.subr.mxu0 0.0
    %153 = vmatpush1.msra.mxu0 0.0
    %154 = vmatprep.subr.mxu0 0.0
    %155 = vmatpush1.msra.mxu0 0.0
    %156 = vmatprep.subr.mxu0 0.0
    %157 = vmatpush1.msra.mxu0 0.0
    %158 = vmatprep.subr.mxu0 0.0
    %159 = vmatpush1.msra.mxu0 0.0
    %160 = vmatprep.subr.mxu0 0.0
    %161 = vmatpush1.msra.mxu0 0.0
    %162 = vmatprep.subr.mxu0 0.0
    %163 = vmatpush1.msra.mxu0 0.0
    %164 = vmatprep.subr.mxu0 0.0
    %165 = vmatpush1.msra.mxu0 0.0
    %166 = vmatprep.subr.mxu0 0.0
    %167 = vmatpush1.msra.mxu0 0.0
    %168 = vmatprep.subr.mxu0 0.0
    %169 = vmatpush1.msra.mxu0 0.0
    %170 = vmatprep.subr.mxu0 0.0
    %171 = vmatpush1.msra.mxu0 0.0
    %172 = vmatprep.subr.mxu0 0.0
    %173 = vmatpush1.msra.mxu0 0.0
    %174 = vmatprep.subr.mxu0 0.0
    %175 = vmatpush1.msra.mxu0 0.0
    %176 = vmatprep.subr.mxu0 0.0
    %177 = vmatpush1.msra.mxu0 0.0
    %178 = vmatprep.subr.mxu0 0.0
    %179 = vmatpush1.msra.mxu0 0.0
    %180 = vmatprep.subr.mxu0 0.0
    %181 = vmatpush1.msra.mxu0 0.0
    %182 = vmatprep.subr.mxu0 0.0
    %183 = vmatpush1.msra.mxu0 0.0
    %184 = vmatprep.subr.mxu0 0.0
    %185 = vmatpush1.msra.mxu0 0.0
    %186 = vmatprep.subr.mxu0 0.0
    %187 = vmatpush1.msra.mxu0 0.0
    %188 = vmatprep.subr.mxu0 0.0
    %189 = vmatpush1.msra.mxu0 0.0
    %190 = vmatprep.subr.mxu0 0.0
    %191 = vmatpush1.msra.mxu0 0.0
    %192 = vmatprep.subr.mxu0 0.0
    %193 = vmatpush1.msra.mxu0 0.0
    %194 = vmatprep.subr.mxu0 0.0
    %195 = vmatpush1.msra.mxu0 0.0
    %196 = vmatprep.subr.mxu0 0.0
    %197 = vmatpush1.msra.mxu0 0.0
    %198 = vmatprep.subr.mxu0 0.0
    %199 = vmatpush1.msra.mxu0 0.0
    %200 = vmatprep.subr.mxu0 0.0
    %201 = vmatpush1.msra.mxu0 0.0
    %202 = vmatprep.subr.mxu0 0.0
    %203 = vmatpush1.msra.mxu0 0.0
    %204 = vmatprep.subr.mxu0 0.0
    %205 = vmatpush1.msra.mxu0 0.0
    %206 = vmatprep.mubr.f32.mxu0 0.0
    %207 = vmatmul.mubr.f32.gmra.mrb[0].mxu0 %v137
    %v208 = vpop.f32.mrb[0].mxu0
    %v209 = vadd.f32 0.0, %v208
    %v210 = vpop.f32.mrb[0].mxu0
    %211 = vmatprep.mubr.f32.mxu0 0.0
    %212 = vmatmul.mubr.f32.gmra.mrb[0].mxu0 %v140
    %v213 = vpop.f32.mrb[0].mxu0
    %v214 = vadd.f32 0.0, %v213
    %v215 = vpop.f32.mrb[0].mxu0
    %216 = vdwg.mxu0
    %v217 = vmul.f32 %v209, 2.0
    %v218 = vmul.f32 %v214, 2.0
    %v219 = vsub.f32 %v217, %v134
    %v220 = vsub.f32 %v218, %v135
    %s221 = scalar_lea.vmem [#allocation2], 16
    %222 = vst.msk [vmem:[%s221] sm:$0xff] %vm100, %v219
    %223 = vst.msk [vmem:[%s221 + $0x8] sm:$0xff] %vm100, %v220
    %v224 = vld [vmem:[%s1] sm:$0xff]
    %225 = vmatprep.subr.mxu0 0.0
    %226 = vmatpush1.msra.mxu0 %v224
    %227 = vmatprep.subr.mxu0 0.0
    %228 = vmatpush1.msra.mxu0 0.0
    %229 = vmatprep.subr.mxu0 0.0
    %230 = vmatpush1.msra.mxu0 0.0
    %231 = vmatprep.subr.mxu0 0.0
    %232 = vmatpush1.msra.mxu0 0.0
    %233 = vmatprep.subr.mxu0 0.0
    %234 = vmatpush1.msra.mxu0 0.0
    %235 = vmatprep.subr.mxu0 0.0
    %236 = vmatpush1.msra.mxu0 0.0
    %237 = vmatprep.subr.mxu0 0.0
    %238 = vmatpush1.msra.mxu0 0.0
    %239 = vmatprep.subr.mxu0 0.0
    %240 = vmatpush1.msra.mxu0 0.0
    %241 = vmatprep.subr.mxu0 0.0
    %242 = vmatpush1.msra.mxu0 0.0
    %243 = vmatprep.subr.mxu0 0.0
    %244 = vmatpush1.msra.mxu0 0.0
    %245 = vmatprep.subr.mxu0 0.0
    %246 = vmatpush1.msra.mxu0 0.0
    %247 = vmatprep.subr.mxu0 0.0
    %248 = vmatpush1.msra.mxu0 0.0
    %249 = vmatprep.subr.mxu0 0.0
    %250 = vmatpush1.msra.mxu0 0.0
    %251 = vmatprep.subr.mxu0 0.0
    %252 = vmatpush1.msra.mxu0 0.0
    %253 = vmatprep.subr.mxu0 0.0
    %254 = vmatpush1.msra.mxu0 0.0
    %255 = vmatprep.subr.mxu0 0.0
    %256 = vmatpush1.msra.mxu0 0.0
    %257 = vmatprep.subr.mxu0 0.0
    %258 = vmatpush1.msra.mxu0 0.0
    %259 = vmatprep.subr.mxu0 0.0
    %260 = vmatpush1.msra.mxu0 0.0
    %261 = vmatprep.subr.mxu0 0.0
    %262 = vmatpush1.msra.mxu0 0.0
    %263 = vmatprep.subr.mxu0 0.0
    %264 = vmatpush1.msra.mxu0 0.0
    %265 = vmatprep.subr.mxu0 0.0
    %266 = vmatpush1.msra.mxu0 0.0
    %267 = vmatprep.subr.mxu0 0.0
    %268 = vmatpush1.msra.mxu0 0.0
    %269 = vmatprep.subr.mxu0 0.0
    %270 = vmatpush1.msra.mxu0 0.0
    %271 = vmatprep.subr.mxu0 0.0
    %272 = vmatpush1.msra.mxu0 0.0
    %273 = vmatprep.subr.mxu0 0.0
    %274 = vmatpush1.msra.mxu0 0.0
    %275 = vmatprep.subr.mxu0 0.0
    %276 = vmatpush1.msra.mxu0 0.0
    %277 = vmatprep.subr.mxu0 0.0
    %278 = vmatpush1.msra.mxu0 0.0
    %279 = vmatprep.subr.mxu0 0.0
    %280 = vmatpush1.msra.mxu0 0.0
    %281 = vmatprep.subr.mxu0 0.0
    %282 = vmatpush1.msra.mxu0 0.0
    %283 = vmatprep.subr.mxu0 0.0
    %284 = vmatpush1.msra.mxu0 0.0
    %285 = vmatprep.subr.mxu0 0.0
    %286 = vmatpush1.msra.mxu0 0.0
    %287 = vmatprep.subr.mxu0 0.0
    %288 = vmatpush1.msra.mxu0 0.0
    %289 = vmatprep.mubr.f32.mxu0 0.0
    %290 = vmatmul.mubr.f32.gmra.mrb[0].mxu0 %v18
    %v291 = vpop.f32.mrb[0].mxu0
    %v292 = vadd.f32 0.0, %v291
    %v293 = vpop.f32.mrb[0].mxu0
    %294 = vmatprep.mubr.f32.mxu0 0.0
    %295 = vmatmul.mubr.f32.gmra.mrb[0].mxu0 %v21
    %v296 = vpop.f32.mrb[0].mxu0
    %v297 = vadd.f32 0.0, %v296
    %v298 = vpop.f32.mrb[0].mxu0
    %299 = vdwg.mxu0
    %300 = vst.msk [vmem:[%s3] sm:$0xff] %vm16, %v292
    %301 = vst.msk [vmem:[%s3 + $0x8] sm:$0xff] %vm16, %v297
    // Predicated region
    $region10: #{tpu_custom_call.1} parent=1 // pred_check
      _
    $region11: #{tpu_custom_call.1} parent=1 // pred_check_branch
      %303 = sbr.rel (0) target = $region13
    $region12: #{tpu_custom_call.1} parent=1 // pred_region
      %s305 = ssub.s32 512, 512
      %306 = vsyncadd [#allocation3], %s305
      %s307 = sshll.u32 [#allocation2], 4
      %s308 = int_to_ptr.vmem [resolvable:$true] %s307
      %313 = dma.vmem_to_hbm [thread:$0]  %s308, 512, %s2, [#allocation3], 128, 128, 8
    $region13: #{tpu_custom_call.1} parent=1 // pred_fallthru
      _
    // Predicated region
    $region14: #{tpu_custom_call.1} parent=1 // pred_check
      _
    $region15: #{tpu_custom_call.1} parent=1 // pred_check_branch
      %315 = sbr.rel (0) target = $region17
    $region16: #{tpu_custom_call.1} parent=1 // pred_region
      _
    $region17: #{tpu_custom_call.1} parent=1 // pred_fallthru
      _
    // Predicated region
    $region18: #{tpu_custom_call.1} parent=1 // pred_check
      _
    $region19: #{tpu_custom_call.1} parent=1 // pred_check_branch
      %317 = sbr.rel (0) target = $region21
    $region20: #{tpu_custom_call.1} parent=1 // pred_region
      %318 = dma.done [#allocation3], 512
    $region21: #{tpu_custom_call.1} parent=1 // pred_fallthru
      _
    // Predicated region
    $region22: #{tpu_custom_call.1} parent=1 // pred_check
      _
    $region23: #{tpu_custom_call.1} parent=1 // pred_check_branch
      %320 = sbr.rel (0) target = $region25
    $region24: #{tpu_custom_call.1} parent=1 // pred_region
      _
    $region25: #{tpu_custom_call.1} parent=1 // pred_fallthru
      _
    %321 = vsyncpa [#allocation3], 1

</llo_original>
